<compile_context>
chip_gen: v7x
topology: tpu7x:2x2x1
jax: 0.10.0
libtpu: 0.0.40
codegen_flags: <defaults>
</compile_context>

<pallas_src>
import jax
import jax.numpy as jnp
import numpy as np
from jax.experimental import pallas as pl
from jax.experimental.pallas import tpu as pltpu

_TILE_BYTES = 8 << 20         # per-block VMEM budget (-> ~32 MiB resident with
                              # double-buffered input + output blocks)
_VMEM_LIMIT_BYTES = 48 << 20  # explicit scoped-VMEM limit: > all default scoped
                              # limits, < v7x's 64 MiB physical VMEM


def _identity_kernel(x_ref, o_ref):
    # The base-class "forward" contributes no transformation: whole-tile copy.
    o_ref[...] = x_ref[...]


def _pick_blocks(rows, cols, itemsize, tile_bytes=_TILE_BYTES):
    """Pick (block_rows, block_cols) for a lane-dense 2D copy.

    Mosaic constraints: the block's last dim must be a multiple of 128 or equal
    the full extent; the second-to-last a multiple of 8 or equal the full
    extent.  Ragged edge blocks are handled by the cdiv grid, so the block does
    not need to evenly divide the array.
    """
    # Lane (last) axis: keep the full width whenever an 8-row stripe of it fits
    # the tile budget; otherwise tile in multiples of 128 lanes.
    lane_budget = max(128, (tile_bytes // (8 * itemsize)) // 128 * 128)
    block_cols = cols if cols <= lane_budget else lane_budget

    # Sublane axis: the largest multiple of 8 that keeps the block within
    # budget, or the full extent when the row count already fits.
    max_rows = max(8, (tile_bytes // (block_cols * itemsize)) // 8 * 8)
    block_rows = rows if rows <= max_rows else max_rows
    return block_rows, block_cols


@jax.jit
def base_model_predict(x):
    """Equivalent of BaseModel.predict: eval-mode, no-grad forward (identity).

    `x` is NCHW; returns an array of identical shape/dtype.
    """
    n, c, h, w = x.shape
    # Lane-dense flatten: rows = N*C, cols = H*W, so the fast axis is as wide
    # as possible (a multiple of 128 for the demo shape -> unmasked stores).
    rows, cols = n * c, h * w
    x2d = x.reshape(rows, cols)

    itemsize = jnp.dtype(x.dtype).itemsize
    block_rows, block_cols = _pick_blocks(rows, cols, itemsize)
    grid = (pl.cdiv(rows, block_rows), pl.cdiv(cols, block_cols))

    out2d = pl.pallas_call(
        _identity_kernel,
        out_shape=jax.ShapeDtypeStruct((rows, cols), x.dtype),
        grid_spec=pl.GridSpec(
            grid=grid,
            in_specs=[pl.BlockSpec((block_rows, block_cols), lambda i, j: (i, j))],
            out_specs=pl.BlockSpec((block_rows, block_cols), lambda i, j: (i, j)),
        ),
        # Pure memory traffic (read + write-back) — let XLA schedule around it.
        cost_estimate=pl.CostEstimate(
            flops=0,
            transcendentals=0,
            bytes_accessed=2 * x.size * itemsize,
        ),
        compiler_params=pltpu.CompilerParams(
            dimension_semantics=("parallel", "parallel"),  # v7x: shard over 2 TCs
            vmem_limit_bytes=_VMEM_LIMIT_BYTES,
        ),
    )(x2d)

    return out2d.reshape(n, c, h, w)


if __name__ == "__main__":
    key = jax.random.PRNGKey(0)
    # Small NCHW input consistent with a typical vision-style forward.
    x = jax.random.normal(key, (2, 4, 16, 16), dtype=jnp.float32)

    y = base_model_predict(x)
    y = jax.block_until_ready(y)

    # Sanity check: abstract-base predict with identity forward preserves x.
    assert y.shape == x.shape and y.dtype == x.dtype
    assert np.allclose(np.asarray(jax.device_get(y)), np.asarray(jax.device_get(x)))

    print("KERNEL_OK")
</pallas_src>

<mosaic_0001>
module attributes {stable_mosaic.version = 11 : i64} {
  func.func @_identity_kernel(%arg0: i32, %arg1: i32, %arg2: memref<8x256xf32, #tpu.memory_space<vmem>>, %arg3: memref<8x256xf32, #tpu.memory_space<vmem>>) attributes {dimension_semantics = [#tpu.dimension_semantics<parallel>, #tpu.dimension_semantics<parallel>], iteration_bounds = array<i64: 1, 1>, scalar_prefetch = 0 : i64, scratch_operands = 0 : i64, tpu.core_type = #tpu.core_type<tc>, window_params = [{transform_indices = @transform_0, window_bounds = array<i64: 8, 256>}, {transform_indices = @transform_1, window_bounds = array<i64: 8, 256>}]} {
    %c0 = arith.constant 0 : index
    %c0_0 = arith.constant 0 : index
    %0 = vector.load %arg2[%c0, %c0_0] : memref<8x256xf32, #tpu.memory_space<vmem>>, vector<8x256xf32>
    %c0_1 = arith.constant 0 : index
    %c0_2 = arith.constant 0 : index
    %1 = vector.load %arg3[%c0_1, %c0_2] : memref<8x256xf32, #tpu.memory_space<vmem>>, vector<8x256xf32>
    tpu.vector_store %arg3[%c0_1, %c0_2], %0 {strides = array<i32>} : memref<8x256xf32, #tpu.memory_space<vmem>>, vector<8x256xf32>,
    return
  }
  func.func @transform_0(%arg0: i32, %arg1: i32) -> (i32, i32) {
    %c0_i32 = arith.constant 0 : i32
    return %arg0, %arg1 : i32, i32
  }
  func.func @transform_1(%arg0: i32, %arg1: i32) -> (i32, i32) {
    %c0_i32 = arith.constant 0 : i32
    return %arg0, %arg1 : i32, i32
  }
}

</mosaic_0001>

<llo_original>
// kernel: base_model_predict.1
$region0: #{base_model_predict.1}
  #allocation0 [shape = 'u32[]', space=smem, size = 0x4, offset = 0x4, fixed_abs, tag = 'smem constant byte address 0x4 - core index']
  #allocation1 [shape = 'u32[144,128]{1,0:T(1,128)}', space=vmem, size = 0x12000, scoped, tag = 'internal scratch']
  %s0 = inlined_call_operand.vmem [shape: f32[8,256], index: 0, kind: input, shape index: {}]
  %s1 = inlined_call_operand.vmem [shape: f32[8,256], index: 1, kind: output, shape index: {}]
  %s2 = sld [smem:[#allocation0]]
  $region14: #{base_model_predict.1} parent=0
    _
  %s4 = ssub.s32 1, %s2
  %s5 = scalar_select 0, %s4, %s2
  // Predicated region
  $region2: #{base_model_predict.1} parent=0 // pred_check
    _
  $region3: #{base_model_predict.1} parent=0 // pred_check_branch
    %7 = sbr.rel (0) target = $region5
  $region4: #{base_model_predict.1} parent=0 // pred_region
    _
  $region5: #{base_model_predict.1} parent=0 // pred_fallthru
    _
  %v8 = vld [vmem:[%s0] sm:$0xff]
  %v9 = vld [vmem:[%s0 + $0x8] sm:$0xff]
  %10 = vst [vmem:[%s1] sm:$0xff] %v8
  %11 = vst [vmem:[%s1 + $0x8] sm:$0xff] %v9
  // Predicated region
  $region6: #{base_model_predict.1} parent=0 // pred_check
    _
  $region7: #{base_model_predict.1} parent=0 // pred_check_branch
    %13 = sbr.rel (0) target = $region9
  $region8: #{base_model_predict.1} parent=0 // pred_region
    _
  $region9: #{base_model_predict.1} parent=0 // pred_fallthru
    _
  // Predicated region
  $region10: #{base_model_predict.1} parent=0 // pred_check
    _
  $region11: #{base_model_predict.1} parent=0 // pred_check_branch
    %15 = sbr.rel (0) target = $region13
  $region12: #{base_model_predict.1} parent=0 // pred_region
    _
  $region13: #{base_model_predict.1} parent=0 // pred_fallthru
    _

</llo_original>
